<compile_context>
chip_gen: v7x
topology: tpu7x:2x2x1
jax: 0.10.0
libtpu: 0.0.40
codegen_flags: <defaults>
</compile_context>

<pallas_src>
import functools

import numpy as np

import jax
import jax.numpy as jnp
from jax.experimental import pallas as pl
from jax.experimental.pallas import tpu as pltpu

_PAD = 128  # lane width; every feature axis is zero-padded to this


def _round_up(n, m):
    return ((n + m - 1) // m) * m


# ---------------------------------------------------------------------------
# Kernel: runs every Linear (+ReLU, +reg) of the autoencoder for one batch tile.
# ---------------------------------------------------------------------------
def _fused_ae_kernel(x_ref, w_ref, b_ref, o_ref, *,
                     layer_info, d_in0, l1, l2, valid_batch):
    """x_ref: (TB, d_in0) f32 input tile (natural last dim).
    w_ref: (L, 128, 128) stacked zero-padded weights, (in, out) layout (f32 or bf16).
    b_ref: (L, 1, 128)   stacked zero-padded biases (f32).
    o_ref: (TB, 128)     padded output of the final Linear.
    layer_info: tuple of (true_out_dim, apply_relu, apply_reg) per layer (static).
    """
    reg_on = (l1 != 0.0) or (l2 != 0.0)
    tb = x_ref.shape[0]

    # Row-validity mask is only needed if the batch tile was padded AND reg is active
    # (padded rows would otherwise pollute the mean after the bias add).  The wrapper
    # guarantees grid=(1,) when reg is on, so the single tile holds the whole batch.
    row_mask = None
    if reg_on and tb > valid_batch:
        row_ids = jax.lax.broadcasted_iota(jnp.int32, (tb, 1), 0)
        row_mask = (row_ids < valid_batch).astype(jnp.float32)

    h = x_ref[...]  # stays in vregs/VMEM for the whole pass
    for idx, (d_out, apply_relu, apply_reg) in enumerate(layer_info):
        k_in = d_in0 if idx == 0 else w_ref.shape[1]
        w = w_ref[idx, :k_in, :]              # (k_in, 128)
        b = b_ref[idx]                        # (1, 128) -> broadcasts over batch rows
        y = jnp.dot(h.astype(w.dtype), w,
                    preferred_element_type=jnp.float32) + b
        if apply_relu:
            y = jnp.maximum(y, 0.0)
        if apply_reg and reg_on:
            if row_mask is not None:
                y = y * row_mask              # zero out padded batch rows
            # F.l1_loss(y,0)=mean(|y|); F.mse_loss(y,0)=mean(y^2); |y|^2 == y^2
            a = jnp.abs(y)
            r1 = jnp.sum(a, axis=-1, keepdims=True)       # lane-wise partial
            r2 = jnp.sum(a * a, axis=-1, keepdims=True)
            s = l1 * jnp.sum(r1) + l2 * jnp.sum(r2)       # one cross-sublane reduce each
            y = y + s * (1.0 / float(valid_batch * d_out))  # true (unpadded) numel
        h = y
    o_ref[...] = h.astype(o_ref.dtype)


# ---------------------------------------------------------------------------
# One-time parameter preparation (hoisted out of the forward path).
# ---------------------------------------------------------------------------
def prepare_autoencoder_params(enc_params, dec_params, weight_dtype=jnp.float32):
    """Stack + zero-pad all Linear layers into lane-dense slabs, once.

    enc/dec params: lists of (W(in,out), b(out,)). Returns a dict consumed by
    autoencoder_forward; weights may be stored bf16 (MXU-native on v6e/v7x),
    biases stay f32 (added after the f32-accumulated matmul).
    """
    layer_seq = []
    for (w, b) in enc_params:
        layer_seq.append((w, b, True, True))        # Linear -> ReLU (+ reg hook)
    for (w, b) in dec_params[:-1]:
        layer_seq.append((w, b, True, False))       # Linear -> ReLU
    w_last, b_last = dec_params[-1]
    layer_seq.append((w_last, b_last, False, False))  # final Linear, no activation

    L = len(layer_seq)
    d_in0 = int(layer_seq[0][0].shape[0])
    d_final = int(layer_seq[-1][0].shape[1])

    w_np = np.zeros((L, _PAD, _PAD), np.float32)
    b_np = np.zeros((L, 1, _PAD), np.float32)
    layer_info = []
    for idx, (w, b, relu, reg) in enumerate(layer_seq):
        di, do = int(w.shape[0]), int(w.shape[1])
        assert di <= _PAD and do <= _PAD, (
            "layer widths > 128 need K/N tiling")  # TODO(synk): wide-layer tiling
        w_np[idx, :di, :do] = np.asarray(w, np.float32)
        b_np[idx, 0, :do] = np.asarray(b, np.float32)
        layer_info.append((do, bool(relu), bool(reg)))

    return dict(
        w_stack=jnp.asarray(w_np, dtype=weight_dtype),
        b_stack=jnp.asarray(b_np, dtype=jnp.float32),
        layer_info=tuple(layer_info),
        d_in0=d_in0,
        d_final=d_final,
    )


# ---------------------------------------------------------------------------
# Forward wrapper.
# ---------------------------------------------------------------------------
def autoencoder_forward(x, prepared, l1_strength=0.0, l2_strength=0.0,
                        block_batch=256):
    """x: (B, layers[0]) f32. `prepared` from prepare_autoencoder_params."""
    w_stack = prepared["w_stack"]
    b_stack = prepared["b_stack"]
    layer_info = prepared["layer_info"]
    d_in0 = prepared["d_in0"]
    d_final = prepared["d_final"]
    L = w_stack.shape[0]

    B = x.shape[0]
    assert x.shape[1] == d_in0, (x.shape, d_in0)
    reg_on = (float(l1_strength) != 0.0) or (float(l2_strength) != 0.0)

    if reg_on:
        # Regularization mean couples all batch rows -> keep the batch in one tile.
        tb = _round_up(B, 8)
    else:
        tb = min(_round_up(B, 8), _round_up(int(block_batch), 8))
    b_pad = _round_up(B, tb)
    grid_n = b_pad // tb

    if b_pad != B:
        x_p = jnp.zeros((b_pad, d_in0), jnp.float32).at[:B].set(
            x.astype(jnp.float32))
    else:
        x_p = x.astype(jnp.float32)

    kernel = functools.partial(
        _fused_ae_kernel,
        layer_info=layer_info,
        d_in0=int(d_in0),
        l1=float(l1_strength),
        l2=float(l2_strength),
        valid_batch=int(B),
    )

    out_p = pl.pallas_call(
        kernel,
        out_shape=jax.ShapeDtypeStruct((b_pad, _PAD), jnp.float32),
        grid=(grid_n,),
        in_specs=[
            # natural last dim (== full array dim) -> no lane-pad HBM round-trip
            pl.BlockSpec((tb, d_in0), lambda i: (i, 0)),
            # constant index maps -> weights/biases DMA'd once, stay VMEM-resident
            pl.BlockSpec((L, _PAD, _PAD), lambda i: (0, 0, 0)),
            pl.BlockSpec((L, 1, _PAD), lambda i: (0, 0, 0)),
        ],
        out_specs=pl.BlockSpec((tb, _PAD), lambda i: (i, 0)),
        compiler_params=pltpu.CompilerParams(
            dimension_semantics=(("arbitrary",) if reg_on else ("parallel",)),
        ),
    )(x_p, w_stack, b_stack)

    return out_p[:B, :d_final]


# ---------------------------------------------------------------------------
# Parameter construction (mimics PyTorch nn.Linear default init, weights stored
# pre-transposed as (in, out)).
# ---------------------------------------------------------------------------
def init_linear_params(key, fan_in, fan_out):
    kw, kb = jax.random.split(key)
    bound = 1.0 / jnp.sqrt(jnp.float32(fan_in))
    w = jax.random.uniform(kw, (fan_in, fan_out), jnp.float32, -bound, bound)
    b = jax.random.uniform(kb, (fan_out,), jnp.float32, -bound, bound)
    return w, b


def build_autoencoder_params(key, layers):
    num_layers = len(layers)
    enc, dec = [], []
    keys = jax.random.split(key, 2 * (num_layers - 1) + 1)
    k_idx = 0
    for i in range(num_layers - 1):
        enc.append(init_linear_params(keys[k_idx], layers[i], layers[i + 1]))
        k_idx += 1
    for i in range(num_layers - 1, 0, -1):
        dec.append(init_linear_params(keys[k_idx], layers[i], layers[i - 1]))
        k_idx += 1
    dec.append(init_linear_params(keys[k_idx], layers[0], layers[0]))
    return enc, dec


def _reference_forward(x, enc_params, dec_params, l1, l2,
                       weight_dtype=jnp.float32):
    """Pure-JAX reference of the same forward semantics (for verification)."""
    def cast(w):
        return w.astype(weight_dtype).astype(jnp.float32)

    h = x
    for (w, b) in enc_params:
        h = jnp.maximum(h @ cast(w) + b, 0.0)
        if l1 != 0.0 or l2 != 0.0:
            h = h + l1 * jnp.mean(jnp.abs(h)) + l2 * jnp.mean(h * h)
    for (w, b) in dec_params[:-1]:
        h = jnp.maximum(h @ cast(w) + b, 0.0)
    w_last, b_last = dec_params[-1]
    return h @ cast(w_last) + b_last


if __name__ == "__main__":
    key = jax.random.PRNGKey(0)
    k_params, k_x1, k_x2, k_x3 = jax.random.split(key, 4)

    # Small config consistent with the module: layers=[64, 32, 16],
    # batch_norm=False, no dropout.
    layers = [64, 32, 16]
    enc_params, dec_params = build_autoencoder_params(k_params, layers)

    # One-time parameter preparation (hoisted out of the forward path).
    prep_f32 = prepare_autoencoder_params(enc_params, dec_params,
                                          weight_dtype=jnp.float32)
    prep_bf16 = prepare_autoencoder_params(enc_params, dec_params,
                                           weight_dtype=jnp.bfloat16)

    # 1) Default config: batch=8, l1=l2=0, f32 weights (exact PyTorch semantics).
    x_small = jax.random.normal(k_x1, (8, layers[0]), jnp.float32)
    out = jax.block_until_ready(autoencoder_forward(x_small, prep_f32))
    assert out.shape == (8, layers[0]), out.shape
    assert out.dtype == jnp.float32, out.dtype
    ref = _reference_forward(x_small, enc_params, dec_params, 0.0, 0.0)
    assert jnp.allclose(out, ref, rtol=1e-3, atol=1e-3), "f32 path mismatch"

    # 2) Regularization path (l1/l2 != 0): single batch tile + padded-row masking.
    x_reg = jax.random.normal(k_x2, (6, layers[0]), jnp.float32)
    out_reg = jax.block_until_ready(
        autoencoder_forward(x_reg, prep_f32, l1_strength=0.01, l2_strength=0.02))
    ref_reg = _reference_forward(x_reg, enc_params, dec_params, 0.01, 0.02)
    assert jnp.allclose(out_reg, ref_reg, rtol=1e-3, atol=1e-3), "reg path mismatch"

    # 3) Batch-tiled (grid=(2,), "parallel") + bf16-weight path (v6e/v7x MXU-native).
    x_big = jax.random.normal(k_x3, (512, layers[0]), jnp.float32)
    out_big = jax.block_until_ready(
        autoencoder_forward(x_big, prep_bf16, block_batch=256))
    assert out_big.shape == (512, layers[0]), out_big.shape
    ref_big = _reference_forward(x_big, enc_params, dec_params, 0.0, 0.0,
                                 weight_dtype=jnp.bfloat16)
    assert jnp.allclose(out_big, ref_big, rtol=3e-2, atol=3e-2), "bf16 path mismatch"

    print("KERNEL_OK")
</pallas_src>

<mosaic_0001>
module attributes {stable_mosaic.version = 11 : i64} {
  func.func @_fused_ae_kernel(%arg0: i32, %arg1: memref<8x64xf32, #tpu.memory_space<vmem>>, %arg2: memref<5x128x128xf32, #tpu.memory_space<vmem>>, %arg3: memref<5x1x128xf32, #tpu.memory_space<vmem>>, %arg4: memref<8x128xf32, #tpu.memory_space<vmem>>) attributes {dimension_semantics = [#tpu.dimension_semantics<parallel>], iteration_bounds = array<i64: 1>, scalar_prefetch = 0 : i64, scratch_operands = 0 : i64, tpu.core_type = #tpu.core_type<tc>, window_params = [{transform_indices = @transform_0, window_bounds = array<i64: 8, 64>}, {pipeline_mode = #tpu.pipeline_mode<synchronous>, transform_indices = @transform_1, window_bounds = array<i64: 5, 128, 128>}, {pipeline_mode = #tpu.pipeline_mode<synchronous>, transform_indices = @transform_2, window_bounds = array<i64: 5, 1, 128>}, {transform_indices = @transform_3, window_bounds = array<i64: 8, 128>}]} {
    %c0 = arith.constant 0 : index
    %c0_0 = arith.constant 0 : index
    %0 = vector.load %arg1[%c0, %c0_0] : memref<8x64xf32, #tpu.memory_space<vmem>>, vector<8x64xf32>
    %c0_1 = arith.constant 0 : index
    %c0_2 = arith.constant 0 : index
    %c0_3 = arith.constant 0 : index
    %1 = vector.load %arg2[%c0_1, %c0_2, %c0_3] : memref<5x128x128xf32, #tpu.memory_space<vmem>>, vector<1x64x128xf32>
    %2 = vector.shape_cast %1 : vector<1x64x128xf32> to vector<64x128xf32>
    %c0_4 = arith.constant 0 : index
    %c0_5 = arith.constant 0 : index
    %c0_6 = arith.constant 0 : index
    %3 = vector.load %arg3[%c0_4, %c0_5, %c0_6] : memref<5x1x128xf32, #tpu.memory_space<vmem>>, vector<1x1x128xf32>
    %4 = vector.shape_cast %3 : vector<1x1x128xf32> to vector<1x128xf32>
    %cst = arith.constant dense<0.000000e+00> : vector<8x128xf32>
    %5 = tpu.matmul %0, %2, %cst {dimension_numbers = #tpu.dot_dimension_numbers<[1], [0], [0], [1], [0, 0, 1, 1], [], []>} : vector<8x64xf32>, vector<64x128xf32>, vector<8x128xf32> -> vector<8x128xf32>
    %6 = vector.broadcast %4 : vector<1x128xf32> to vector<8x128xf32>
    %7 = arith.addf %5, %6 : vector<8x128xf32>
    %cst_7 = arith.constant 0.000000e+00 : f32
    %8 = vector.broadcast %cst_7 : f32 to vector<8x128xf32>
    %9 = arith.maximumf %7, %8 : vector<8x128xf32>
    %c1 = arith.constant 1 : index
    %c0_8 = arith.constant 0 : index
    %c0_9 = arith.constant 0 : index
    %10 = vector.load %arg2[%c1, %c0_8, %c0_9] : memref<5x128x128xf32, #tpu.memory_space<vmem>>, vector<1x128x128xf32>
    %11 = vector.shape_cast %10 : vector<1x128x128xf32> to vector<128x128xf32>
    %c1_10 = arith.constant 1 : index
    %c0_11 = arith.constant 0 : index
    %c0_12 = arith.constant 0 : index
    %12 = vector.load %arg3[%c1_10, %c0_11, %c0_12] : memref<5x1x128xf32, #tpu.memory_space<vmem>>, vector<1x1x128xf32>
    %13 = vector.shape_cast %12 : vector<1x1x128xf32> to vector<1x128xf32>
    %cst_13 = arith.constant dense<0.000000e+00> : vector<8x128xf32>
    %14 = tpu.matmul %9, %11, %cst_13 {dimension_numbers = #tpu.dot_dimension_numbers<[1], [0], [0], [1], [0, 0, 1, 1], [], []>} : vector<8x128xf32>, vector<128x128xf32>, vector<8x128xf32> -> vector<8x128xf32>
    %15 = vector.broadcast %13 : vector<1x128xf32> to vector<8x128xf32>
    %16 = arith.addf %14, %15 : vector<8x128xf32>
    %cst_14 = arith.constant 0.000000e+00 : f32
    %17 = vector.broadcast %cst_14 : f32 to vector<8x128xf32>
    %18 = arith.maximumf %16, %17 : vector<8x128xf32>
    %c2 = arith.constant 2 : index
    %c0_15 = arith.constant 0 : index
    %c0_16 = arith.constant 0 : index
    %19 = vector.load %arg2[%c2, %c0_15, %c0_16] : memref<5x128x128xf32, #tpu.memory_space<vmem>>, vector<1x128x128xf32>
    %20 = vector.shape_cast %19 : vector<1x128x128xf32> to vector<128x128xf32>
    %c2_17 = arith.constant 2 : index
    %c0_18 = arith.constant 0 : index
    %c0_19 = arith.constant 0 : index
    %21 = vector.load %arg3[%c2_17, %c0_18, %c0_19] : memref<5x1x128xf32, #tpu.memory_space<vmem>>, vector<1x1x128xf32>
    %22 = vector.shape_cast %21 : vector<1x1x128xf32> to vector<1x128xf32>
    %cst_20 = arith.constant dense<0.000000e+00> : vector<8x128xf32>
    %23 = tpu.matmul %18, %20, %cst_20 {dimension_numbers = #tpu.dot_dimension_numbers<[1], [0], [0], [1], [0, 0, 1, 1], [], []>} : vector<8x128xf32>, vector<128x128xf32>, vector<8x128xf32> -> vector<8x128xf32>
    %24 = vector.broadcast %22 : vector<1x128xf32> to vector<8x128xf32>
    %25 = arith.addf %23, %24 : vector<8x128xf32>
    %cst_21 = arith.constant 0.000000e+00 : f32
    %26 = vector.broadcast %cst_21 : f32 to vector<8x128xf32>
    %27 = arith.maximumf %25, %26 : vector<8x128xf32>
    %c3 = arith.constant 3 : index
    %c0_22 = arith.constant 0 : index
    %c0_23 = arith.constant 0 : index
    %28 = vector.load %arg2[%c3, %c0_22, %c0_23] : memref<5x128x128xf32, #tpu.memory_space<vmem>>, vector<1x128x128xf32>
    %29 = vector.shape_cast %28 : vector<1x128x128xf32> to vector<128x128xf32>
    %c3_24 = arith.constant 3 : index
    %c0_25 = arith.constant 0 : index
    %c0_26 = arith.constant 0 : index
    %30 = vector.load %arg3[%c3_24, %c0_25, %c0_26] : memref<5x1x128xf32, #tpu.memory_space<vmem>>, vector<1x1x128xf32>
    %31 = vector.shape_cast %30 : vector<1x1x128xf32> to vector<1x128xf32>
    %cst_27 = arith.constant dense<0.000000e+00> : vector<8x128xf32>
    %32 = tpu.matmul %27, %29, %cst_27 {dimension_numbers = #tpu.dot_dimension_numbers<[1], [0], [0], [1], [0, 0, 1, 1], [], []>} : vector<8x128xf32>, vector<128x128xf32>, vector<8x128xf32> -> vector<8x128xf32>
    %33 = vector.broadcast %31 : vector<1x128xf32> to vector<8x128xf32>
    %34 = arith.addf %32, %33 : vector<8x128xf32>
    %cst_28 = arith.constant 0.000000e+00 : f32
    %35 = vector.broadcast %cst_28 : f32 to vector<8x128xf32>
    %36 = arith.maximumf %34, %35 : vector<8x128xf32>
    %c4 = arith.constant 4 : index
    %c0_29 = arith.constant 0 : index
    %c0_30 = arith.constant 0 : index
    %37 = vector.load %arg2[%c4, %c0_29, %c0_30] : memref<5x128x128xf32, #tpu.memory_space<vmem>>, vector<1x128x128xf32>
    %38 = vector.shape_cast %37 : vector<1x128x128xf32> to vector<128x128xf32>
    %c4_31 = arith.constant 4 : index
    %c0_32 = arith.constant 0 : index
    %c0_33 = arith.constant 0 : index
    %39 = vector.load %arg3[%c4_31, %c0_32, %c0_33] : memref<5x1x128xf32, #tpu.memory_space<vmem>>, vector<1x1x128xf32>
    %40 = vector.shape_cast %39 : vector<1x1x128xf32> to vector<1x128xf32>
    %cst_34 = arith.constant dense<0.000000e+00> : vector<8x128xf32>
    %41 = tpu.matmul %36, %38, %cst_34 {dimension_numbers = #tpu.dot_dimension_numbers<[1], [0], [0], [1], [0, 0, 1, 1], [], []>} : vector<8x128xf32>, vector<128x128xf32>, vector<8x128xf32> -> vector<8x128xf32>
    %42 = vector.broadcast %40 : vector<1x128xf32> to vector<8x128xf32>
    %43 = arith.addf %41, %42 : vector<8x128xf32>
    %c0_35 = arith.constant 0 : index
    %c0_36 = arith.constant 0 : index
    %44 = vector.load %arg4[%c0_35, %c0_36] : memref<8x128xf32, #tpu.memory_space<vmem>>, vector<8x128xf32>
    tpu.vector_store %arg4[%c0_35, %c0_36], %43 {strides = array<i32>} : memref<8x128xf32, #tpu.memory_space<vmem>>, vector<8x128xf32>,
    return
  }
  func.func @transform_0(%arg0: i32) -> (i32, i32) {
    %c0_i32 = arith.constant 0 : i32
    %c0_i32_0 = arith.constant 0 : i32
    return %arg0, %c0_i32 : i32, i32
  }
  func.func @transform_1(%arg0: i32) -> (i32, i32, i32) {
    %c0_i32 = arith.constant 0 : i32
    %c0_i32_0 = arith.constant 0 : i32
    %c0_i32_1 = arith.constant 0 : i32
    %c0_i32_2 = arith.constant 0 : i32
    return %c0_i32, %c0_i32_0, %c0_i32_1 : i32, i32, i32
  }
  func.func @transform_2(%arg0: i32) -> (i32, i32, i32) {
    %c0_i32 = arith.constant 0 : i32
    %c0_i32_0 = arith.constant 0 : i32
    %c0_i32_1 = arith.constant 0 : i32
    %c0_i32_2 = arith.constant 0 : i32
    return %c0_i32, %c0_i32_0, %c0_i32_1 : i32, i32, i32
  }
  func.func @transform_3(%arg0: i32) -> (i32, i32) {
    %c0_i32 = arith.constant 0 : i32
    %c0_i32_0 = arith.constant 0 : i32
    return %arg0, %c0_i32 : i32, i32
  }
}

</mosaic_0001>

<llo_original>
// kernel: tpu_custom_call.1
$region0: #{tpu_custom_call.1}
  #allocation0 [shape = 'u32[]', space=smem, size = 0x4, offset = 0x4, fixed_abs, tag = 'smem constant byte address 0x4 - core index']
  #allocation1 [shape = 'u32[144,128]{1,0:T(1,128)}', space=vmem, size = 0x12000, scoped, tag = 'internal scratch']
  %s0 = inlined_call_operand.hbm [shape: f32[8,64], index: 0, kind: input, shape index: {}]
  %s1 = inlined_call_operand.hbm [shape: f32[5,128,128], index: 1, kind: input, shape index: {}]
  %s2 = inlined_call_operand.vmem [shape: f32[5,1,128], index: 2, kind: input, shape index: {}]
  %s3 = inlined_call_operand.hbm [shape: f32[8,128], index: 3, kind: output, shape index: {}]
  %s4 = sld [smem:[#allocation0]]
  $region30: #{tpu_custom_call.1} parent=0
    _
  %s6 = ssub.s32 1, %s4
  %s7 = scalar_select 0, %s6, %s4
  $region1: #{tpu_custom_call.1} parent=0
    #allocation2 [shape = 'u8[4096]{0}', space=vmem, size = 0x1000, scoped, tag = 'input window, operand 0, single buffered']
    #allocation3 [shape = 's32[1]{0}', space=sflag, size = 0x4, scoped, tag = 'scoped memory for tpu_custom_call.1']
    #allocation4 [shape = 's32[1]{0}', space=sflag, size = 0x4, scoped, tag = 'scoped memory for tpu_custom_call.1']
    #allocation5 [shape = 'u8[327680]{0}', space=vmem, size = 0x50000, scoped, tag = 'input window, operand 1, single buffered']
    #allocation6 [shape = 's32[1]{0}', space=sflag, size = 0x4, scoped, tag = 'scoped memory for tpu_custom_call.1']
    #allocation7 [shape = 'u8[4096]{0}', space=vmem, size = 0x1000, scoped, tag = 'output window, operand 0, single buffered']
    %8 = vsyncpa [#allocation3], 0
    %9 = vsyncpa [#allocation6], 0
    %10 = vsyncpa [#allocation4], 0
    // Predicated region
    $region2: #{tpu_custom_call.1} parent=1 // pred_check
      _
    $region3: #{tpu_custom_call.1} parent=1 // pred_check_branch
      %12 = sbr.rel (0) target = $region5
    $region4: #{tpu_custom_call.1} parent=1 // pred_region
      %s14 = ssub.s32 128, 128
      %15 = vsyncadd [#allocation3], %s14
      %s17 = sshll.u32 [#allocation2], 4
      %s18 = int_to_ptr.vmem [resolvable:$true] %s17
      %20 = dma.hbm_to_vmem [thread:$0]  %s0, 128, %s18, [#allocation3]
    $region5: #{tpu_custom_call.1} parent=1 // pred_fallthru
      _
    // Predicated region
    $region6: #{tpu_custom_call.1} parent=1 // pred_check
      _
    $region7: #{tpu_custom_call.1} parent=1 // pred_check_branch
      %22 = sbr.rel (0) target = $region9
    $region8: #{tpu_custom_call.1} parent=1 // pred_region
      %s24 = ssub.s32 10240, 10240
      %25 = vsyncadd [#allocation6], %s24
      %s26 = sshll.u32 [#allocation5], 4
      %s27 = int_to_ptr.vmem [resolvable:$true] %s26
      %32 = dma.hbm_to_vmem [thread:$0]  %s1, 10240, %s27, [#allocation6], 128, 128, 8
    $region9: #{tpu_custom_call.1} parent=1 // pred_fallthru
      _
    // Predicated region
    $region10: #{tpu_custom_call.1} parent=1 // pred_check
      _
    $region11: #{tpu_custom_call.1} parent=1 // pred_check_branch
      %34 = sbr.rel (0) target = $region13
    $region12: #{tpu_custom_call.1} parent=1 // pred_region
      _
    $region13: #{tpu_custom_call.1} parent=1 // pred_fallthru
      _
    // Predicated region
    $region14: #{tpu_custom_call.1} parent=1 // pred_check
      _
    $region15: #{tpu_custom_call.1} parent=1 // pred_check_branch
      %36 = sbr.rel (0) target = $region17
    $region16: #{tpu_custom_call.1} parent=1 // pred_region
      %37 = dma.done [#allocation3], 128
    $region17: #{tpu_custom_call.1} parent=1 // pred_fallthru
      _
    // Predicated region
    $region18: #{tpu_custom_call.1} parent=1 // pred_check
      _
    $region19: #{tpu_custom_call.1} parent=1 // pred_check_branch
      %39 = sbr.rel (0) target = $region21
    $region20: #{tpu_custom_call.1} parent=1 // pred_region
      %40 = dma.done [#allocation6], 10240
    $region21: #{tpu_custom_call.1} parent=1 // pred_fallthru
      _
    %v41 = vld [vmem:[#allocation2] sm:$0xff]
    %v42 = vld [vmem:[#allocation5] sm:$0xff]
    %v43 = vld [vmem:[#allocation5 + $0x8] sm:$0xff]
    %v44 = vld [vmem:[#allocation5 + $0x10] sm:$0xff]
    %v45 = vld [vmem:[#allocation5 + $0x18] sm:$0xff]
    %v46 = vld [vmem:[#allocation5 + $0x20] sm:$0xff]
    %v47 = vld [vmem:[#allocation5 + $0x28] sm:$0xff]
    %v48 = vld [vmem:[#allocation5 + $0x30] sm:$0xff]
    %v49 = vld [vmem:[#allocation5 + $0x38] sm:$0xff]
    %v50 = vld [vmem:[%s2] sm:$0x1]
    %v52 = vlaneseq
    %v53 = vshrl.u32 %v52, 7
    %v54 = vsub.s32 0, %v53
    %v55 = vrot.slane %v50, %v54
    %vm57 = vcmask 523264
    %v59 = vsel %vm57, %v41, 0
    %61 = vmatprep.subr.mxu0 0.0
    %62 = vmatpush1.msra.mxu0 %v42
    %63 = vmatprep.subr.mxu0 0.0
    %64 = vmatpush1.msra.mxu0 %v43
    %65 = vmatprep.subr.mxu0 0.0
    %66 = vmatpush1.msra.mxu0 %v44
    %67 = vmatprep.subr.mxu0 0.0
    %68 = vmatpush1.msra.mxu0 %v45
    %69 = vmatprep.subr.mxu0 0.0
    %70 = vmatpush1.msra.mxu0 %v46
    %71 = vmatprep.subr.mxu0 0.0
    %72 = vmatpush1.msra.mxu0 %v47
    %73 = vmatprep.subr.mxu0 0.0
    %74 = vmatpush1.msra.mxu0 %v48
    %75 = vmatprep.subr.mxu0 0.0
    %76 = vmatpush1.msra.mxu0 %v49
    %77 = vmatprep.subr.mxu0 0.0
    %78 = vmatpush1.msra.mxu0 0.0
    %79 = vmatprep.subr.mxu0 0.0
    %80 = vmatpush1.msra.mxu0 0.0
    %81 = vmatprep.subr.mxu0 0.0
    %82 = vmatpush1.msra.mxu0 0.0
    %83 = vmatprep.subr.mxu0 0.0
    %84 = vmatpush1.msra.mxu0 0.0
    %85 = vmatprep.subr.mxu0 0.0
    %86 = vmatpush1.msra.mxu0 0.0
    %87 = vmatprep.subr.mxu0 0.0
    %88 = vmatpush1.msra.mxu0 0.0
    %89 = vmatprep.subr.mxu0 0.0
    %90 = vmatpush1.msra.mxu0 0.0
    %91 = vmatprep.subr.mxu0 0.0
    %92 = vmatpush1.msra.mxu0 0.0
    %93 = vmatprep.subr.mxu0 0.0
    %94 = vmatpush1.msra.mxu0 0.0
    %95 = vmatprep.subr.mxu0 0.0
    %96 = vmatpush1.msra.mxu0 0.0
    %97 = vmatprep.subr.mxu0 0.0
    %98 = vmatpush1.msra.mxu0 0.0
    %99 = vmatprep.subr.mxu0 0.0
    %100 = vmatpush1.msra.mxu0 0.0
    %101 = vmatprep.subr.mxu0 0.0
    %102 = vmatpush1.msra.mxu0 0.0
    %103 = vmatprep.subr.mxu0 0.0
    %104 = vmatpush1.msra.mxu0 0.0
    %105 = vmatprep.subr.mxu0 0.0
    %106 = vmatpush1.msra.mxu0 0.0
    %107 = vmatprep.subr.mxu0 0.0
    %108 = vmatpush1.msra.mxu0 0.0
    %109 = vmatprep.subr.mxu0 0.0
    %110 = vmatpush1.msra.mxu0 0.0
    %111 = vmatprep.subr.mxu0 0.0
    %112 = vmatpush1.msra.mxu0 0.0
    %113 = vmatprep.subr.mxu0 0.0
    %114 = vmatpush1.msra.mxu0 0.0
    %115 = vmatprep.subr.mxu0 0.0
    %116 = vmatpush1.msra.mxu0 0.0
    %117 = vmatprep.subr.mxu0 0.0
    %118 = vmatpush1.msra.mxu0 0.0
    %119 = vmatprep.subr.mxu0 0.0
    %120 = vmatpush1.msra.mxu0 0.0
    %121 = vmatprep.subr.mxu0 0.0
    %122 = vmatpush1.msra.mxu0 0.0
    %123 = vmatprep.subr.mxu0 0.0
    %124 = vmatpush1.msra.mxu0 0.0
    %125 = vmatprep.mubr.f32.mxu0 0.0
    %126 = vmatmul.mubr.f32.gmra.mrb[0].mxu0 %v59
    %v127 = vpop.f32.mrb[0].mxu0
    %v128 = vadd.f32 %v55, %v127
    %v129 = vpop.f32.mrb[0].mxu0
    %130 = vdwg.mxu0
    %v131 = vmax.f32 %v128, 0.0
    %s132 = scalar_lea.vmem [#allocation5], 128
    %v133 = vld [vmem:[%s132] sm:$0xff]
    %v134 = vld [vmem:[%s132 + $0x8] sm:$0xff]
    %v135 = vld [vmem:[%s132 + $0x10] sm:$0xff]
    %v136 = vld [vmem:[%s132 + $0x18] sm:$0xff]
    %v137 = vld [vmem:[%s132 + $0x20] sm:$0xff]
    %v138 = vld [vmem:[%s132 + $0x28] sm:$0xff]
    %v139 = vld [vmem:[%s132 + $0x30] sm:$0xff]
    %v140 = vld [vmem:[%s132 + $0x38] sm:$0xff]
    %v141 = vld [vmem:[%s132 + $0x40] sm:$0xff]
    %v142 = vld [vmem:[%s132 + $0x48] sm:$0xff]
    %v143 = vld [vmem:[%s132 + $0x50] sm:$0xff]
    %v144 = vld [vmem:[%s132 + $0x58] sm:$0xff]
    %v145 = vld [vmem:[%s132 + $0x60] sm:$0xff]
    %v146 = vld [vmem:[%s132 + $0x68] sm:$0xff]
    %v147 = vld [vmem:[%s132 + $0x70] sm:$0xff]
    %v148 = vld [vmem:[%s132 + $0x78] sm:$0xff]
    %s149 = scalar_lea.vmem %s2, 1
    %v150 = vld [vmem:[%s149] sm:$0x1]
    %v152 = vlaneseq
    %v153 = vshrl.u32 %v152, 7
    %v154 = vsub.s32 0, %v153
    %v155 = vrot.slane %v150, %v154
    %157 = vmatprep.subr.mxu0 0.0
    %158 = vmatpush1.msra.mxu0 %v133
    %159 = vmatprep.subr.mxu0 0.0
    %160 = vmatpush1.msra.mxu0 %v134
    %161 = vmatprep.subr.mxu0 0.0
    %162 = vmatpush1.msra.mxu0 %v135
    %163 = vmatprep.subr.mxu0 0.0
    %164 = vmatpush1.msra.mxu0 %v136
    %165 = vmatprep.subr.mxu0 0.0
    %166 = vmatpush1.msra.mxu0 %v137
    %167 = vmatprep.subr.mxu0 0.0
    %168 = vmatpush1.msra.mxu0 %v138
    %169 = vmatprep.subr.mxu0 0.0
    %170 = vmatpush1.msra.mxu0 %v139
    %171 = vmatprep.subr.mxu0 0.0
    %172 = vmatpush1.msra.mxu0 %v140
    %173 = vmatprep.subr.mxu0 0.0
    %174 = vmatpush1.msra.mxu0 %v141
    %175 = vmatprep.subr.mxu0 0.0
    %176 = vmatpush1.msra.mxu0 %v142
    %177 = vmatprep.subr.mxu0 0.0
    %178 = vmatpush1.msra.mxu0 %v143
    %179 = vmatprep.subr.mxu0 0.0
    %180 = vmatpush1.msra.mxu0 %v144
    %181 = vmatprep.subr.mxu0 0.0
    %182 = vmatpush1.msra.mxu0 %v145
    %183 = vmatprep.subr.mxu0 0.0
    %184 = vmatpush1.msra.mxu0 %v146
    %185 = vmatprep.subr.mxu0 0.0
    %186 = vmatpush1.msra.mxu0 %v147
    %187 = vmatprep.subr.mxu0 0.0
    %188 = vmatpush1.msra.mxu0 %v148
    %189 = vmatprep.subr.mxu0 0.0
    %190 = vmatpush1.msra.mxu0 0.0
    %191 = vmatprep.subr.mxu0 0.0
    %192 = vmatpush1.msra.mxu0 0.0
    %193 = vmatprep.subr.mxu0 0.0
    %194 = vmatpush1.msra.mxu0 0.0
    %195 = vmatprep.subr.mxu0 0.0
    %196 = vmatpush1.msra.mxu0 0.0
    %197 = vmatprep.subr.mxu0 0.0
    %198 = vmatpush1.msra.mxu0 0.0
    %199 = vmatprep.subr.mxu0 0.0
    %200 = vmatpush1.msra.mxu0 0.0
    %201 = vmatprep.subr.mxu0 0.0
    %202 = vmatpush1.msra.mxu0 0.0
    %203 = vmatprep.subr.mxu0 0.0
    %204 = vmatpush1.msra.mxu0 0.0
    %205 = vmatprep.subr.mxu0 0.0
    %206 = vmatpush1.msra.mxu0 0.0
    %207 = vmatprep.subr.mxu0 0.0
    %208 = vmatpush1.msra.mxu0 0.0
    %209 = vmatprep.subr.mxu0 0.0
    %210 = vmatpush1.msra.mxu0 0.0
    %211 = vmatprep.subr.mxu0 0.0
    %212 = vmatpush1.msra.mxu0 0.0
    %213 = vmatprep.subr.mxu0 0.0
    %214 = vmatpush1.msra.mxu0 0.0
    %215 = vmatprep.subr.mxu0 0.0
    %216 = vmatpush1.msra.mxu0 0.0
    %217 = vmatprep.subr.mxu0 0.0
    %218 = vmatpush1.msra.mxu0 0.0
    %219 = vmatprep.subr.mxu0 0.0
    %220 = vmatpush1.msra.mxu0 0.0
    %221 = vmatprep.mubr.f32.mxu0 0.0
    %222 = vmatmul.mubr.f32.gmra.mrb[0].mxu0 %v131
    %v223 = vpop.f32.mrb[0].mxu0
    %v224 = vadd.f32 %v155, %v223
    %v225 = vpop.f32.mrb[0].mxu0
    %226 = vdwg.mxu0
    %v227 = vmax.f32 %v224, 0.0
    %s228 = scalar_lea.vmem [#allocation5], 256
    %v229 = vld [vmem:[%s228] sm:$0xff]
    %v230 = vld [vmem:[%s228 + $0x8] sm:$0xff]
    %v231 = vld [vmem:[%s228 + $0x10] sm:$0xff]
    %v232 = vld [vmem:[%s228 + $0x18] sm:$0xff]
    %v233 = vld [vmem:[%s228 + $0x20] sm:$0xff]
    %v234 = vld [vmem:[%s228 + $0x28] sm:$0xff]
    %v235 = vld [vmem:[%s228 + $0x30] sm:$0xff]
    %v236 = vld [vmem:[%s228 + $0x38] sm:$0xff]
    %v237 = vld [vmem:[%s228 + $0x40] sm:$0xff]
    %v238 = vld [vmem:[%s228 + $0x48] sm:$0xff]
    %v239 = vld [vmem:[%s228 + $0x50] sm:$0xff]
    %v240 = vld [vmem:[%s228 + $0x58] sm:$0xff]
    %v241 = vld [vmem:[%s228 + $0x60] sm:$0xff]
    %v242 = vld [vmem:[%s228 + $0x68] sm:$0xff]
    %v243 = vld [vmem:[%s228 + $0x70] sm:$0xff]
    %v244 = vld [vmem:[%s228 + $0x78] sm:$0xff]
    %s245 = scalar_lea.vmem %s2, 2
    %v246 = vld [vmem:[%s245] sm:$0x1]
    %v248 = vlaneseq
    %v249 = vshrl.u32 %v248, 7
    %v250 = vsub.s32 0, %v249
    %v251 = vrot.slane %v246, %v250
    %253 = vmatprep.subr.mxu0 0.0
    %254 = vmatpush1.msra.mxu0 %v229
    %255 = vmatprep.subr.mxu0 0.0
    %256 = vmatpush1.msra.mxu0 %v230
    %257 = vmatprep.subr.mxu0 0.0
    %258 = vmatpush1.msra.mxu0 %v231
    %259 = vmatprep.subr.mxu0 0.0
    %260 = vmatpush1.msra.mxu0 %v232
    %261 = vmatprep.subr.mxu0 0.0
    %262 = vmatpush1.msra.mxu0 %v233
    %263 = vmatprep.subr.mxu0 0.0
    %264 = vmatpush1.msra.mxu0 %v234
    %265 = vmatprep.subr.mxu0 0.0
    %266 = vmatpush1.msra.mxu0 %v235
    %267 = vmatprep.subr.mxu0 0.0
    %268 = vmatpush1.msra.mxu0 %v236
    %269 = vmatprep.subr.mxu0 0.0
    %270 = vmatpush1.msra.mxu0 %v237
    %271 = vmatprep.subr.mxu0 0.0
    %272 = vmatpush1.msra.mxu0 %v238
    %273 = vmatprep.subr.mxu0 0.0
    %274 = vmatpush1.msra.mxu0 %v239
    %275 = vmatprep.subr.mxu0 0.0
    %276 = vmatpush1.msra.mxu0 %v240
    %277 = vmatprep.subr.mxu0 0.0
    %278 = vmatpush1.msra.mxu0 %v241
    %279 = vmatprep.subr.mxu0 0.0
    %280 = vmatpush1.msra.mxu0 %v242
    %281 = vmatprep.subr.mxu0 0.0
    %282 = vmatpush1.msra.mxu0 %v243
    %283 = vmatprep.subr.mxu0 0.0
    %284 = vmatpush1.msra.mxu0 %v244
    %285 = vmatprep.subr.mxu0 0.0
    %286 = vmatpush1.msra.mxu0 0.0
    %287 = vmatprep.subr.mxu0 0.0
    %288 = vmatpush1.msra.mxu0 0.0
    %289 = vmatprep.subr.mxu0 0.0
    %290 = vmatpush1.msra.mxu0 0.0
    %291 = vmatprep.subr.mxu0 0.0
    %292 = vmatpush1.msra.mxu0 0.0
    %293 = vmatprep.subr.mxu0 0.0
    %294 = vmatpush1.msra.mxu0 0.0
    %295 = vmatprep.subr.mxu0 0.0
    %296 = vmatpush1.msra.mxu0 0.0
    %297 = vmatprep.subr.mxu0 0.0
    %298 = vmatpush1.msra.mxu0 0.0
    %299 = vmatprep.subr.mxu0 0.0
    %300 = vmatpush1.msra.mxu0 0.0
    %301 = vmatprep.subr.mxu0 0.0
    %302 = vmatpush1.msra.mxu0 0.0
    %303 = vmatprep.subr.mxu0 0.0
    %304 = vmatpush1.msra.mxu0 0.0
    %305 = vmatprep.subr.mxu0 0.0
    %306 = vmatpush1.msra.mxu0 0.0
    %307 = vmatprep.subr.mxu0 0.0
    %308 = vmatpush1.msra.mxu0 0.0
    %309 = vmatprep.subr.mxu0 0.0
    %310 = vmatpush1.msra.mxu0 0.0
    %311 = vmatprep.subr.mxu0 0.0
    %312 = vmatpush1.msra.mxu0 0.0
    %313 = vmatprep.subr.mxu0 0.0
    %314 = vmatpush1.msra.mxu0 0.0
    %315 = vmatprep.subr.mxu0 0.0
    %316 = vmatpush1.msra.mxu0 0.0
    %317 = vmatprep.mubr.f32.mxu0 0.0
    %318 = vmatmul.mubr.f32.gmra.mrb[0].mxu0 %v227
    %v319 = vpop.f32.mrb[0].mxu0
    %v320 = vadd.f32 %v251, %v319
    %v321 = vpop.f32.mrb[0].mxu0
    %322 = vdwg.mxu0
    %v323 = vmax.f32 %v320, 0.0
    %s324 = scalar_lea.vmem [#allocation5], 384
    %v325 = vld [vmem:[%s324] sm:$0xff]
    %v326 = vld [vmem:[%s324 + $0x8] sm:$0xff]
    %v327 = vld [vmem:[%s324 + $0x10] sm:$0xff]
    %v328 = vld [vmem:[%s324 + $0x18] sm:$0xff]
    %v329 = vld [vmem:[%s324 + $0x20] sm:$0xff]
    %v330 = vld [vmem:[%s324 + $0x28] sm:$0xff]
    %v331 = vld [vmem:[%s324 + $0x30] sm:$0xff]
    %v332 = vld [vmem:[%s324 + $0x38] sm:$0xff]
    %v333 = vld [vmem:[%s324 + $0x40] sm:$0xff]
    %v334 = vld [vmem:[%s324 + $0x48] sm:$0xff]
    %v335 = vld [vmem:[%s324 + $0x50] sm:$0xff]
    %v336 = vld [vmem:[%s324 + $0x58] sm:$0xff]
    %v337 = vld [vmem:[%s324 + $0x60] sm:$0xff]
    %v338 = vld [vmem:[%s324 + $0x68] sm:$0xff]
    %v339 = vld [vmem:[%s324 + $0x70] sm:$0xff]
    %v340 = vld [vmem:[%s324 + $0x78] sm:$0xff]
    %s341 = scalar_lea.vmem %s2, 3
    %v342 = vld [vmem:[%s341] sm:$0x1]
    %v344 = vlaneseq
    %v345 = vshrl.u32 %v344, 7
    %v346 = vsub.s32 0, %v345
    %v347 = vrot.slane %v342, %v346
    %349 = vmatprep.subr.mxu0 0.0
    %350 = vmatpush1.msra.mxu0 %v325
    %351 = vmatprep.subr.mxu0 0.0
    %352 = vmatpush1.msra.mxu0 %v326
    %353 = vmatprep.subr.mxu0 0.0
    %354 = vmatpush1.msra.mxu0 %v327
    %355 = vmatprep.subr.mxu0 0.0
    %356 = vmatpush1.msra.mxu0 %v328
    %357 = vmatprep.subr.mxu0 0.0
    %358 = vmatpush1.msra.mxu0 %v329
    %359 = vmatprep.subr.mxu0 0.0
    %360 = vmatpush1.msra.mxu0 %v330
    %361 = vmatprep.subr.mxu0 0.0
    %362 = vmatpush1.msra.mxu0 %v331
    %363 = vmatprep.subr.mxu0 0.0
    %364 = vmatpush1.msra.mxu0 %v332
    %365 = vmatprep.subr.mxu0 0.0
    %366 = vmatpush1.msra.mxu0 %v333
    %367 = vmatprep.subr.mxu0 0.0
    %368 = vmatpush1.msra.mxu0 %v334
    %369 = vmatprep.subr.mxu0 0.0
    %370 = vmatpush1.msra.mxu0 %v335
    %371 = vmatprep.subr.mxu0 0.0
    %372 = vmatpush1.msra.mxu0 %v336
    %373 = vmatprep.subr.mxu0 0.0
    %374 = vmatpush1.msra.mxu0 %v337
    %375 = vmatprep.subr.mxu0 0.0
    %376 = vmatpush1.msra.mxu0 %v338
    %377 = vmatprep.subr.mxu0 0.0
    %378 = vmatpush1.msra.mxu0 %v339
    %379 = vmatprep.subr.mxu0 0.0
    %380 = vmatpush1.msra.mxu0 %v340
    %381 = vmatprep.subr.mxu0 0.0
    %382 = vmatpush1.msra.mxu0 0.0
    %383 = vmatprep.subr.mxu0 0.0
    %384 = vmatpush1.msra.mxu0 0.0
    %385 = vmatprep.subr.mxu0 0.0
    %386 = vmatpush1.msra.mxu0 0.0
    %387 = vmatprep.subr.mxu0 0.0
    %388 = vmatpush1.msra.mxu0 0.0
    %389 = vmatprep.subr.mxu0 0.0
    %390 = vmatpush1.msra.mxu0 0.0
    %391 = vmatprep.subr.mxu0 0.0
    %392 = vmatpush1.msra.mxu0 0.0
    %393 = vmatprep.subr.mxu0 0.0
    %394 = vmatpush1.msra.mxu0 0.0
    %395 = vmatprep.subr.mxu0 0.0
    %396 = vmatpush1.msra.mxu0 0.0
    %397 = vmatprep.subr.mxu0 0.0
    %398 = vmatpush1.msra.mxu0 0.0
    %399 = vmatprep.subr.mxu0 0.0
    %400 = vmatpush1.msra.mxu0 0.0
    %401 = vmatprep.subr.mxu0 0.0
    %402 = vmatpush1.msra.mxu0 0.0
    %403 = vmatprep.subr.mxu0 0.0
    %404 = vmatpush1.msra.mxu0 0.0
    %405 = vmatprep.subr.mxu0 0.0
    %406 = vmatpush1.msra.mxu0 0.0
    %407 = vmatprep.subr.mxu0 0.0
    %408 = vmatpush1.msra.mxu0 0.0
    %409 = vmatprep.subr.mxu0 0.0
    %410 = vmatpush1.msra.mxu0 0.0
    %411 = vmatprep.subr.mxu0 0.0
    %412 = vmatpush1.msra.mxu0 0.0
    %413 = vmatprep.mubr.f32.mxu0 0.0
    %414 = vmatmul.mubr.f32.gmra.mrb[0].mxu0 %v323
    %v415 = vpop.f32.mrb[0].mxu0
    %v416 = vadd.f32 %v347, %v415
    %v417 = vpop.f32.mrb[0].mxu0
    %418 = vdwg.mxu0
    %v419 = vmax.f32 %v416, 0.0
    %s420 = scalar_lea.vmem [#allocation5], 512
    %v421 = vld [vmem:[%s420] sm:$0xff]
    %v422 = vld [vmem:[%s420 + $0x8] sm:$0xff]
    %v423 = vld [vmem:[%s420 + $0x10] sm:$0xff]
    %v424 = vld [vmem:[%s420 + $0x18] sm:$0xff]
    %v425 = vld [vmem:[%s420 + $0x20] sm:$0xff]
    %v426 = vld [vmem:[%s420 + $0x28] sm:$0xff]
    %v427 = vld [vmem:[%s420 + $0x30] sm:$0xff]
    %v428 = vld [vmem:[%s420 + $0x38] sm:$0xff]
    %v429 = vld [vmem:[%s420 + $0x40] sm:$0xff]
    %v430 = vld [vmem:[%s420 + $0x48] sm:$0xff]
    %v431 = vld [vmem:[%s420 + $0x50] sm:$0xff]
    %v432 = vld [vmem:[%s420 + $0x58] sm:$0xff]
    %v433 = vld [vmem:[%s420 + $0x60] sm:$0xff]
    %v434 = vld [vmem:[%s420 + $0x68] sm:$0xff]
    %v435 = vld [vmem:[%s420 + $0x70] sm:$0xff]
    %v436 = vld [vmem:[%s420 + $0x78] sm:$0xff]
    %s437 = scalar_lea.vmem %s2, 4
    %v438 = vld [vmem:[%s437] sm:$0x1]
    %v440 = vlaneseq
    %v441 = vshrl.u32 %v440, 7
    %v442 = vsub.s32 0, %v441
    %v443 = vrot.slane %v438, %v442
    %445 = vmatprep.subr.mxu0 0.0
    %446 = vmatpush1.msra.mxu0 %v421
    %447 = vmatprep.subr.mxu0 0.0
    %448 = vmatpush1.msra.mxu0 %v422
    %449 = vmatprep.subr.mxu0 0.0
    %450 = vmatpush1.msra.mxu0 %v423
    %451 = vmatprep.subr.mxu0 0.0
    %452 = vmatpush1.msra.mxu0 %v424
    %453 = vmatprep.subr.mxu0 0.0
    %454 = vmatpush1.msra.mxu0 %v425
    %455 = vmatprep.subr.mxu0 0.0
    %456 = vmatpush1.msra.mxu0 %v426
    %457 = vmatprep.subr.mxu0 0.0
    %458 = vmatpush1.msra.mxu0 %v427
    %459 = vmatprep.subr.mxu0 0.0
    %460 = vmatpush1.msra.mxu0 %v428
    %461 = vmatprep.subr.mxu0 0.0
    %462 = vmatpush1.msra.mxu0 %v429
    %463 = vmatprep.subr.mxu0 0.0
    %464 = vmatpush1.msra.mxu0 %v430
    %465 = vmatprep.subr.mxu0 0.0
    %466 = vmatpush1.msra.mxu0 %v431
    %467 = vmatprep.subr.mxu0 0.0
    %468 = vmatpush1.msra.mxu0 %v432
    %469 = vmatprep.subr.mxu0 0.0
    %470 = vmatpush1.msra.mxu0 %v433
    %471 = vmatprep.subr.mxu0 0.0
    %472 = vmatpush1.msra.mxu0 %v434
    %473 = vmatprep.subr.mxu0 0.0
    %474 = vmatpush1.msra.mxu0 %v435
    %475 = vmatprep.subr.mxu0 0.0
    %476 = vmatpush1.msra.mxu0 %v436
    %477 = vmatprep.subr.mxu0 0.0
    %478 = vmatpush1.msra.mxu0 0.0
    %479 = vmatprep.subr.mxu0 0.0
    %480 = vmatpush1.msra.mxu0 0.0
    %481 = vmatprep.subr.mxu0 0.0
    %482 = vmatpush1.msra.mxu0 0.0
    %483 = vmatprep.subr.mxu0 0.0
    %484 = vmatpush1.msra.mxu0 0.0
    %485 = vmatprep.subr.mxu0 0.0
    %486 = vmatpush1.msra.mxu0 0.0
    %487 = vmatprep.subr.mxu0 0.0
    %488 = vmatpush1.msra.mxu0 0.0
    %489 = vmatprep.subr.mxu0 0.0
    %490 = vmatpush1.msra.mxu0 0.0
    %491 = vmatprep.subr.mxu0 0.0
    %492 = vmatpush1.msra.mxu0 0.0
    %493 = vmatprep.subr.mxu0 0.0
    %494 = vmatpush1.msra.mxu0 0.0
    %495 = vmatprep.subr.mxu0 0.0
    %496 = vmatpush1.msra.mxu0 0.0
    %497 = vmatprep.subr.mxu0 0.0
    %498 = vmatpush1.msra.mxu0 0.0
    %499 = vmatprep.subr.mxu0 0.0
    %500 = vmatpush1.msra.mxu0 0.0
    %501 = vmatprep.subr.mxu0 0.0
    %502 = vmatpush1.msra.mxu0 0.0
    %503 = vmatprep.subr.mxu0 0.0
    %504 = vmatpush1.msra.mxu0 0.0
    %505 = vmatprep.subr.mxu0 0.0
    %506 = vmatpush1.msra.mxu0 0.0
    %507 = vmatprep.subr.mxu0 0.0
    %508 = vmatpush1.msra.mxu0 0.0
    %509 = vmatprep.mubr.f32.mxu0 0.0
    %510 = vmatmul.mubr.f32.gmra.mrb[0].mxu0 %v419
    %v511 = vpop.f32.mrb[0].mxu0
    %v512 = vadd.f32 %v443, %v511
    %v513 = vpop.f32.mrb[0].mxu0
    %514 = vdwg.mxu0
    %515 = vst [vmem:[#allocation7] sm:$0xff] %v512
    // Predicated region
    $region22: #{tpu_custom_call.1} parent=1 // pred_check
      _
    $region23: #{tpu_custom_call.1} parent=1 // pred_check_branch
      %517 = sbr.rel (0) target = $region25
    $region24: #{tpu_custom_call.1} parent=1 // pred_region
      %s519 = ssub.s32 128, 128
      %520 = vsyncadd [#allocation4], %s519
      %s522 = sshll.u32 [#allocation7], 4
      %s523 = int_to_ptr.vmem [resolvable:$true] %s522
      %525 = dma.vmem_to_hbm [thread:$0]  %s523, 128, %s3, [#allocation4]
    $region25: #{tpu_custom_call.1} parent=1 // pred_fallthru
      _
    // Predicated region
    $region26: #{tpu_custom_call.1} parent=1 // pred_check
      _
    $region27: #{tpu_custom_call.1} parent=1 // pred_check_branch
      %527 = sbr.rel (0) target = $region29
    $region28: #{tpu_custom_call.1} parent=1 // pred_region
      %528 = dma.done [#allocation4], 128
    $region29: #{tpu_custom_call.1} parent=1 // pred_fallthru
      _
    %529 = vsyncpa [#allocation3], 1
    %530 = vsyncpa [#allocation6], 1
    %531 = vsyncpa [#allocation4], 1

</llo_original>
